<compile_context>
chip_gen: v7x
topology: tpu7x:2x2x1
jax: 0.10.0
libtpu: 0.0.40
codegen_flags: <defaults>
</compile_context>

<pallas_src>
import numpy as np
import jax
import jax.numpy as jnp
from jax.experimental import pallas as pl
from jax.experimental.pallas import tpu as pltpu


def _round_up(x, m):
    return ((x + m - 1) // m) * m


def _cdiv(a, b):
    return -(-a // b)


# ---------------------------------------------------------------------------
# Kernel
# ---------------------------------------------------------------------------
def critic_kernel(sa_ref, w1_ref, b1_ref, w2_ref, b2_ref, w3_ref, b3_ref,
                  out_ref):
    # Activations arrive as f32; cast to bf16 only at the MXU operand boundary.
    sa = sa_ref[...].astype(jnp.bfloat16)                       # (TB, S+A)

    # fcs1 (+ action pass-through lanes) + ReLU, f32 accumulation / f32 bias.
    xs = jnp.dot(sa, w1_ref[...],
                 preferred_element_type=jnp.float32) + b1_ref[...]
    xs = jnp.maximum(xs, 0.0)                                   # (TB, H1P)

    # fc2 over [xs | relu(a) | relu(-a) | 0...] — the extended W2 makes this
    # exactly concat([xs, action]) @ W2.
    h = jnp.dot(xs.astype(jnp.bfloat16), w2_ref[...],
                preferred_element_type=jnp.float32) + b2_ref[...]
    h = jnp.maximum(h, 0.0)                                     # (TB, H2P)

    # fc3: single output unit -> VPU multiply + XLU cross-lane reduce in f32.
    q = jnp.sum(h * w3_ref[...], axis=-1)                       # (TB,)

    # Lane-dense store: one (1, 1, TB) row per grid step.
    out_ref[...] = q.reshape(1, 1, -1) + b3_ref[...]


# ---------------------------------------------------------------------------
# Wrapper
# ---------------------------------------------------------------------------
def critic_forward(state, action, kernel_params, *, block_b=1024):
    """state: (B, S) f32, action: (B, A) f32 -> (B, 1) f32."""
    w1p, b1p, w2p, b2p, w3_row, b3p = kernel_params
    B, S = state.shape
    A = action.shape[1]
    SA = S + A
    H1P = w1p.shape[1]
    H2P = w2p.shape[1]
    assert w1p.shape[0] == SA, "packed W1 must cover state+action rows"

    # Single concatenated input stream (no HBM traffic increase: same bytes).
    sa = jnp.concatenate([state, action], axis=1)               # (B, S+A) f32

    # Batch tiling:
    #  * >= 2 grid steps when B >= 16 (lets "parallel" shard over v7x's 2 TCs),
    #  * TB rounded up to the 8-row sublane granule,
    #  * padding waste capped at < 8 rows per tile.
    n_tiles = max(_cdiv(B, block_b), min(2, _cdiv(B, 8)))
    TB = _round_up(_cdiv(B, n_tiles), 8)
    B_pad = n_tiles * TB
    if B_pad != B:
        sa = jnp.pad(sa, ((0, B_pad - B), (0, 0)))

    def resident(shape):
        return pl.BlockSpec(shape, lambda i: (0,) * len(shape))

    out = pl.pallas_call(
        critic_kernel,
        out_shape=jax.ShapeDtypeStruct((n_tiles, 1, TB), jnp.float32),
        grid_spec=pltpu.PrefetchScalarGridSpec(
            num_scalar_prefetch=0,
            grid=(n_tiles,),
            in_specs=[
                pl.BlockSpec((TB, SA), lambda i: (i, 0)),   # state||action block
                resident((SA, H1P)),        # W1' (bf16, action pass-through)
                resident((1, H1P)),         # b1  (f32)
                resident((H1P, H2P)),       # W2' (bf16, action rows folded in)
                resident((1, H2P)),         # b2  (f32)
                resident((1, H2P)),         # W3 as a row (f32, VPU head)
                resident((1, 1, 1)),        # b3  (f32)
            ],
            out_specs=pl.BlockSpec((1, 1, TB), lambda i: (i, 0, 0)),
        ),
        compiler_params=pltpu.CompilerParams(
            dimension_semantics=("parallel",),
            vmem_limit_bytes=32 * 1024 * 1024,  # safe on v5e/v6e/v7x
        ),
    )(sa, w1p, b1p, w2p, b2p, w3_row, b3p)

    return out.reshape(B_pad, 1)[:B]


# ---------------------------------------------------------------------------
# Parameter init (mirrors Critic.reset_parameters) and kernel packing
# ---------------------------------------------------------------------------
def init_critic_params(key, state_size, action_size,
                       fcs1_units=350, fc2_units=280):
    """Logical (unpadded, f32) parameters, weights stored as (in, out).

    NOTE: the reference `hidden_init` uses weight.size()[0] (= out_features) as
    "fan_in"; we replicate that limit choice for fidelity (do not "fix" it).
    Biases use PyTorch's default Linear bias init (uniform +/- 1/sqrt(in_feat)).
    """
    ks = jax.random.split(key, 6)

    lim1 = 1.0 / np.sqrt(fcs1_units)
    w1 = jax.random.uniform(ks[0], (state_size, fcs1_units),
                            minval=-lim1, maxval=lim1, dtype=jnp.float32)
    blim1 = 1.0 / np.sqrt(state_size)
    b1 = jax.random.uniform(ks[1], (1, fcs1_units),
                            minval=-blim1, maxval=blim1, dtype=jnp.float32)

    lim2 = 1.0 / np.sqrt(fc2_units)
    w2 = jax.random.uniform(ks[2], (fcs1_units + action_size, fc2_units),
                            minval=-lim2, maxval=lim2, dtype=jnp.float32)
    blim2 = 1.0 / np.sqrt(fcs1_units + action_size)
    b2 = jax.random.uniform(ks[3], (1, fc2_units),
                            minval=-blim2, maxval=blim2, dtype=jnp.float32)

    w3 = jax.random.uniform(ks[4], (fc2_units, 1),
                            minval=-3e-3, maxval=3e-3, dtype=jnp.float32)
    blim3 = 1.0 / np.sqrt(fc2_units)
    b3 = jax.random.uniform(ks[5], (1, 1),
                            minval=-blim3, maxval=blim3, dtype=jnp.float32)

    return (w1, b1, w2, b2, w3, b3)


def pack_params_for_kernel(params, state_size, action_size):
    """Pad hidden dims to lane multiples, fold the action path into W1/W2,
    and cast MXU weights to bf16. Exact modulo bf16 weight quantization."""
    w1, b1, w2, b2, w3, b3 = params
    S, H1 = w1.shape
    H2 = w2.shape[1]
    A = action_size
    assert S == state_size
    H1P = _round_up(H1 + 2 * A, 128)   # 350 + 16 -> 384
    H2P = _round_up(H2, 128)           # 280      -> 384

    # W1': (S+A, H1P). Action rows carry +I / -I into the pad lanes so that
    # after relu the lanes [H1, H1+A) hold relu(a) and [H1+A, H1+2A) hold
    # relu(-a); state rows never touch those lanes (exact).
    eye = jnp.eye(A, dtype=jnp.float32)
    w1p = jnp.zeros((S + A, H1P), jnp.float32)
    w1p = w1p.at[:S, :H1].set(w1)
    w1p = w1p.at[S:, H1:H1 + A].set(eye)
    w1p = w1p.at[S:, H1 + A:H1 + 2 * A].set(-eye)
    w1p = w1p.astype(jnp.bfloat16)

    b1p = jnp.zeros((1, H1P), jnp.float32).at[:, :H1].set(b1)

    # W2': (H1P, H2P). Rows [0,H1) = state part; rows [H1,H1+A) = W2_a;
    # rows [H1+A,H1+2A) = -W2_a, so relu(a)@W2_a + relu(-a)@(-W2_a) == a@W2_a.
    w2s = w2[:H1, :]
    w2a = w2[H1:, :]
    w2p = jnp.zeros((H1P, H2P), jnp.float32)
    w2p = w2p.at[:H1, :H2].set(w2s)
    w2p = w2p.at[H1:H1 + A, :H2].set(w2a)
    w2p = w2p.at[H1 + A:H1 + 2 * A, :H2].set(-w2a)
    w2p = w2p.astype(jnp.bfloat16)

    b2p = jnp.zeros((1, H2P), jnp.float32).at[:, :H2].set(b2)

    w3_row = jnp.zeros((1, H2P), jnp.float32).at[:, :H2].set(w3[:, 0])  # f32 head
    b3p = b3.reshape(1, 1, 1)
    return (w1p, b1p, w2p, b2p, w3_row, b3p)


# ---------------------------------------------------------------------------
# References for validation
# ---------------------------------------------------------------------------
def critic_ref(state, action, params):
    """Pure-JAX f32 reference mirroring the PyTorch forward exactly."""
    w1, b1, w2, b2, w3, b3 = params
    xs = jax.nn.relu(state @ w1 + b1)
    h = jnp.concatenate([xs, action], axis=1)
    h = jax.nn.relu(h @ w2 + b2)
    return h @ w3 + b3


def critic_ref_matched(state, action, kernel_params):
    """Reference using the same folded/padded/bf16 params + casts as the kernel."""
    w1p, b1p, w2p, b2p, w3_row, b3p = kernel_params
    sa = jnp.concatenate([state, action], axis=1).astype(jnp.bfloat16)
    xs = jnp.maximum(
        jnp.dot(sa, w1p, preferred_element_type=jnp.float32) + b1p, 0.0)
    h = jnp.maximum(
        jnp.dot(xs.astype(jnp.bfloat16), w2p,
                preferred_element_type=jnp.float32) + b2p, 0.0)
    return jnp.sum(h * w3_row, axis=-1, keepdims=True) + b3p.reshape(1, 1)


# ---------------------------------------------------------------------------
if __name__ == "__main__":
    B, STATE, ACTION = 8, 32, 8

    key = jax.random.PRNGKey(0)
    k_state, k_action, k_params = jax.random.split(key, 3)

    state = jax.random.normal(k_state, (B, STATE), dtype=jnp.float32)
    action = jax.random.normal(k_action, (B, ACTION), dtype=jnp.float32)

    params = init_critic_params(k_params, STATE, ACTION)
    kparams = pack_params_for_kernel(params, STATE, ACTION)

    q = critic_forward(state, action, kparams)
    q = jax.block_until_ready(q)
    assert q.shape == (B, 1)

    # Tight check against a reference with identical (folded, bf16) numerics.
    q_matched = critic_ref_matched(state, action, kparams)
    np.testing.assert_allclose(np.asarray(q), np.asarray(q_matched),
                               rtol=1e-4, atol=1e-4)

    # Looser check against the exact f32 PyTorch-equivalent forward
    # (difference comes only from bf16 weight/activation quantization).
    q_f32 = critic_ref(state, action, params)
    np.testing.assert_allclose(np.asarray(q), np.asarray(q_f32),
                               rtol=2e-2, atol=2e-2)

    print("KERNEL_OK")
</pallas_src>

<mosaic_0001>
module attributes {stable_mosaic.version = 11 : i64} {
  func.func @critic_kernel(%arg0: i32, %arg1: memref<8x40xf32, #tpu.memory_space<vmem>>, %arg2: memref<40x384xbf16, #tpu.memory_space<vmem>>, %arg3: memref<1x384xf32, #tpu.memory_space<vmem>>, %arg4: memref<384x384xbf16, #tpu.memory_space<vmem>>, %arg5: memref<1x384xf32, #tpu.memory_space<vmem>>, %arg6: memref<1x384xf32, #tpu.memory_space<vmem>>, %arg7: memref<1x1x1xf32, #tpu.memory_space<vmem>>, %arg8: memref<1x1x8xf32, #tpu.memory_space<vmem>>) attributes {dimension_semantics = [#tpu.dimension_semantics<parallel>], iteration_bounds = array<i64: 1>, scalar_prefetch = 0 : i64, scratch_operands = 0 : i64, tpu.core_type = #tpu.core_type<tc>, window_params = [{transform_indices = @transform_0, window_bounds = array<i64: 8, 40>}, {pipeline_mode = #tpu.pipeline_mode<synchronous>, transform_indices = @transform_1, window_bounds = array<i64: 40, 384>}, {pipeline_mode = #tpu.pipeline_mode<synchronous>, transform_indices = @transform_2, window_bounds = array<i64: 1, 384>}, {pipeline_mode = #tpu.pipeline_mode<synchronous>, transform_indices = @transform_3, window_bounds = array<i64: 384, 384>}, {pipeline_mode = #tpu.pipeline_mode<synchronous>, transform_indices = @transform_4, window_bounds = array<i64: 1, 384>}, {pipeline_mode = #tpu.pipeline_mode<synchronous>, transform_indices = @transform_5, window_bounds = array<i64: 1, 384>}, {pipeline_mode = #tpu.pipeline_mode<synchronous>, transform_indices = @transform_6, window_bounds = array<i64: 1, 1, 1>}, {transform_indices = @transform_7, window_bounds = array<i64: 1, 1, 8>}]} {
    %c0 = arith.constant 0 : index
    %c0_0 = arith.constant 0 : index
    %0 = vector.load %arg1[%c0, %c0_0] : memref<8x40xf32, #tpu.memory_space<vmem>>, vector<8x40xf32>
    %1 = arith.truncf %0 : vector<8x40xf32> to vector<8x40xbf16>
    %c0_1 = arith.constant 0 : index
    %c0_2 = arith.constant 0 : index
    %2 = vector.load %arg2[%c0_1, %c0_2] : memref<40x384xbf16, #tpu.memory_space<vmem>>, vector<40x384xbf16>
    %cst = arith.constant dense<0.000000e+00> : vector<8x384xf32>
    %3 = tpu.matmul %1, %2, %cst {dimension_numbers = #tpu.dot_dimension_numbers<[1], [0], [0], [1], [0, 0, 1, 1], [], []>} : vector<8x40xbf16>, vector<40x384xbf16>, vector<8x384xf32> -> vector<8x384xf32>
    %c0_3 = arith.constant 0 : index
    %c0_4 = arith.constant 0 : index
    %4 = vector.load %arg3[%c0_3, %c0_4] : memref<1x384xf32, #tpu.memory_space<vmem>>, vector<1x384xf32>
    %5 = vector.broadcast %4 : vector<1x384xf32> to vector<8x384xf32>
    %6 = arith.addf %3, %5 : vector<8x384xf32>
    %cst_5 = arith.constant 0.000000e+00 : f32
    %7 = vector.broadcast %cst_5 : f32 to vector<8x384xf32>
    %8 = arith.maximumf %6, %7 : vector<8x384xf32>
    %9 = arith.truncf %8 : vector<8x384xf32> to vector<8x384xbf16>
    %c0_6 = arith.constant 0 : index
    %c0_7 = arith.constant 0 : index
    %10 = vector.load %arg4[%c0_6, %c0_7] : memref<384x384xbf16, #tpu.memory_space<vmem>>, vector<384x384xbf16>
    %cst_8 = arith.constant dense<0.000000e+00> : vector<8x384xf32>
    %11 = tpu.matmul %9, %10, %cst_8 {dimension_numbers = #tpu.dot_dimension_numbers<[1], [0], [0], [1], [0, 0, 1, 1], [], []>} : vector<8x384xbf16>, vector<384x384xbf16>, vector<8x384xf32> -> vector<8x384xf32>
    %c0_9 = arith.constant 0 : index
    %c0_10 = arith.constant 0 : index
    %12 = vector.load %arg5[%c0_9, %c0_10] : memref<1x384xf32, #tpu.memory_space<vmem>>, vector<1x384xf32>
    %13 = vector.broadcast %12 : vector<1x384xf32> to vector<8x384xf32>
    %14 = arith.addf %11, %13 : vector<8x384xf32>
    %cst_11 = arith.constant 0.000000e+00 : f32
    %15 = vector.broadcast %cst_11 : f32 to vector<8x384xf32>
    %16 = arith.maximumf %14, %15 : vector<8x384xf32>
    %c0_12 = arith.constant 0 : index
    %c0_13 = arith.constant 0 : index
    %17 = vector.load %arg6[%c0_12, %c0_13] : memref<1x384xf32, #tpu.memory_space<vmem>>, vector<1x384xf32>
    %18 = vector.broadcast %17 : vector<1x384xf32> to vector<8x384xf32>
    %19 = arith.mulf %16, %18 : vector<8x384xf32>
    %cst_14 = arith.constant dense<0.000000e+00> : vector<8xf32>
    %20 = vector.multi_reduction <add>, %19, %cst_14 [1] : vector<8x384xf32> to vector<8xf32>
    %21 = vector.shape_cast %20 : vector<8xf32> to vector<1x1x8xf32>
    %c0_15 = arith.constant 0 : index
    %c0_16 = arith.constant 0 : index
    %c0_17 = arith.constant 0 : index
    %22 = vector.load %arg7[%c0_15, %c0_16, %c0_17] : memref<1x1x1xf32, #tpu.memory_space<vmem>>, vector<1x1x1xf32>
    %23 = vector.broadcast %22 : vector<1x1x1xf32> to vector<1x1x8xf32>
    %24 = arith.addf %21, %23 : vector<1x1x8xf32>
    %c0_18 = arith.constant 0 : index
    %c0_19 = arith.constant 0 : index
    %c0_20 = arith.constant 0 : index
    %25 = vector.load %arg8[%c0_18, %c0_19, %c0_20] : memref<1x1x8xf32, #tpu.memory_space<vmem>>, vector<1x1x8xf32>
    tpu.vector_store %arg8[%c0_18, %c0_19, %c0_20], %24 {strides = array<i32>} : memref<1x1x8xf32, #tpu.memory_space<vmem>>, vector<1x1x8xf32>,
    return
  }
  func.func @transform_0(%arg0: i32) -> (i32, i32) {
    %c0_i32 = arith.constant 0 : i32
    %c0_i32_0 = arith.constant 0 : i32
    return %arg0, %c0_i32 : i32, i32
  }
  func.func @transform_1(%arg0: i32) -> (i32, i32) {
    %c0_i32 = arith.constant 0 : i32
    %c0_i32_0 = arith.constant 0 : i32
    %c0_i32_1 = arith.constant 0 : i32
    return %c0_i32, %c0_i32_0 : i32, i32
  }
  func.func @transform_2(%arg0: i32) -> (i32, i32) {
    %c0_i32 = arith.constant 0 : i32
    %c0_i32_0 = arith.constant 0 : i32
    %c0_i32_1 = arith.constant 0 : i32
    return %c0_i32, %c0_i32_0 : i32, i32
  }
  func.func @transform_3(%arg0: i32) -> (i32, i32) {
    %c0_i32 = arith.constant 0 : i32
    %c0_i32_0 = arith.constant 0 : i32
    %c0_i32_1 = arith.constant 0 : i32
    return %c0_i32, %c0_i32_0 : i32, i32
  }
  func.func @transform_4(%arg0: i32) -> (i32, i32) {
    %c0_i32 = arith.constant 0 : i32
    %c0_i32_0 = arith.constant 0 : i32
    %c0_i32_1 = arith.constant 0 : i32
    return %c0_i32, %c0_i32_0 : i32, i32
  }
  func.func @transform_5(%arg0: i32) -> (i32, i32) {
    %c0_i32 = arith.constant 0 : i32
    %c0_i32_0 = arith.constant 0 : i32
    %c0_i32_1 = arith.constant 0 : i32
    return %c0_i32, %c0_i32_0 : i32, i32
  }
  func.func @transform_6(%arg0: i32) -> (i32, i32, i32) {
    %c0_i32 = arith.constant 0 : i32
    %c0_i32_0 = arith.constant 0 : i32
    %c0_i32_1 = arith.constant 0 : i32
    %c0_i32_2 = arith.constant 0 : i32
    return %c0_i32, %c0_i32_0, %c0_i32_1 : i32, i32, i32
  }
  func.func @transform_7(%arg0: i32) -> (i32, i32, i32) {
    %c0_i32 = arith.constant 0 : i32
    %c0_i32_0 = arith.constant 0 : i32
    %c0_i32_1 = arith.constant 0 : i32
    return %arg0, %c0_i32, %c0_i32_0 : i32, i32, i32
  }
}

</mosaic_0001>

<llo_original>
// kernel: tpu_custom_call.1
$region0: #{tpu_custom_call.1}
  #allocation0 [shape = 'u32[]', space=smem, size = 0x4, offset = 0x4, fixed_abs, tag = 'smem constant byte address 0x4 - core index']
  #allocation1 [shape = 'u32[144,128]{1,0:T(1,128)}', space=vmem, size = 0x12000, scoped, tag = 'internal scratch']
  #allocation2 [shape = 'f32[1,1,1]{2,1,0:T(1,128)S(1)}', space=vmem, size = 0x200, scoped, tag = 'scoped memory for tpu_custom_call.1']
  %s0 = inlined_call_operand.hbm [shape: f32[8,40], index: 0, kind: input, shape index: {}]
  %s1 = inlined_call_operand.hbm [shape: bf16[40,384], index: 1, kind: input, shape index: {}]
  %s2 = inlined_call_operand.vmem [shape: f32[1,384], index: 2, kind: input, shape index: {}]
  %s3 = inlined_call_operand.hbm [shape: bf16[384,384], index: 3, kind: input, shape index: {}]
  %s4 = inlined_call_operand.vmem [shape: f32[1,384], index: 4, kind: input, shape index: {}]
  %s5 = inlined_call_operand.vmem [shape: f32[1,384], index: 5, kind: input, shape index: {}]
  %s6 = inlined_call_operand.<no memory space> [shape: f32[1,1,1], index: 6, kind: input, shape index: {}]
  %s7 = inlined_call_operand.hbm [shape: f32[1,1,8], index: 7, kind: output, shape index: {}]
  %s8 = sld [smem:[#allocation0]]
  $region50: #{tpu_custom_call.1} parent=0
    _
  %s10 = ssub.s32 1, %s8
  %s11 = scalar_select 0, %s10, %s8
  %v12 = vstv %s6
  %13 = vst [vmem:[#allocation2] sm:$0x1] %v12
  $region1: #{tpu_custom_call.1} parent=0
    #allocation3 [shape = 'u8[4096]{0}', space=vmem, size = 0x1000, scoped, tag = 'input window, operand 0, single buffered']
    #allocation4 [shape = 's32[1]{0}', space=sflag, size = 0x4, scoped, tag = 'scoped memory for tpu_custom_call.1']
    #allocation5 [shape = 's32[1]{0}', space=sflag, size = 0x4, scoped, tag = 'scoped memory for tpu_custom_call.1']
    #allocation6 [shape = 'u8[30720]{0}', space=vmem, size = 0x7800, scoped, tag = 'input window, operand 1, single buffered']
    #allocation7 [shape = 's32[1]{0}', space=sflag, size = 0x4, scoped, tag = 'scoped memory for tpu_custom_call.1']
    #allocation8 [shape = 'u8[294912]{0}', space=vmem, size = 0x48000, scoped, tag = 'input window, operand 3, single buffered']
    #allocation9 [shape = 'u8[512]{0}', space=vmem, size = 0x400, scoped, tag = 'output window, operand 0, single buffered']
    %14 = vsyncpa [#allocation4], 0
    %15 = vsyncpa [#allocation7], 0
    %16 = vsyncpa [#allocation5], 0
    // Predicated region
    $region2: #{tpu_custom_call.1} parent=1 // pred_check
      _
    $region3: #{tpu_custom_call.1} parent=1 // pred_check_branch
      %18 = sbr.rel (0) target = $region5
    $region4: #{tpu_custom_call.1} parent=1 // pred_region
      %s20 = ssub.s32 128, 128
      %21 = vsyncadd [#allocation4], %s20
      %s23 = sshll.u32 [#allocation3], 4
      %s24 = int_to_ptr.vmem [resolvable:$true] %s23
      %26 = dma.hbm_to_vmem [thread:$0]  %s0, 128, %s24, [#allocation4]
    $region5: #{tpu_custom_call.1} parent=1 // pred_fallthru
      _
    // Predicated region
    $region6: #{tpu_custom_call.1} parent=1 // pred_check
      _
    $region7: #{tpu_custom_call.1} parent=1 // pred_check_branch
      %28 = sbr.rel (0) target = $region9
    $region8: #{tpu_custom_call.1} parent=1 // pred_region
      %s30 = ssub.s32 960, 960
      %31 = vsyncadd [#allocation7], %s30
      %s32 = sshll.u32 [#allocation6], 4
      %s33 = int_to_ptr.vmem [resolvable:$true] %s32
      %38 = dma.hbm_to_vmem [thread:$0]  %s1, 960, %s33, [#allocation7], 192, 192, 12
    $region9: #{tpu_custom_call.1} parent=1 // pred_fallthru
      _
    // Predicated region
    $region10: #{tpu_custom_call.1} parent=1 // pred_check
      _
    $region11: #{tpu_custom_call.1} parent=1 // pred_check_branch
      %40 = sbr.rel (0) target = $region13
    $region12: #{tpu_custom_call.1} parent=1 // pred_region
      _
    $region13: #{tpu_custom_call.1} parent=1 // pred_fallthru
      _
    // Predicated region
    $region14: #{tpu_custom_call.1} parent=1 // pred_check
      _
    $region15: #{tpu_custom_call.1} parent=1 // pred_check_branch
      %42 = sbr.rel (0) target = $region17
    $region16: #{tpu_custom_call.1} parent=1 // pred_region
      %s44 = ssub.s32 9216, 9216
      %45 = vsyncadd [#allocation7], %s44
      %s46 = sshll.u32 [#allocation8], 4
      %s47 = int_to_ptr.vmem [resolvable:$true] %s46
      %52 = dma.hbm_to_vmem [thread:$0]  %s3, 9216, %s47, [#allocation7], 192, 192, 12
    $region17: #{tpu_custom_call.1} parent=1 // pred_fallthru
      _
    // Predicated region
    $region18: #{tpu_custom_call.1} parent=1 // pred_check
      _
    $region19: #{tpu_custom_call.1} parent=1 // pred_check_branch
      %54 = sbr.rel (0) target = $region21
    $region20: #{tpu_custom_call.1} parent=1 // pred_region
      _
    $region21: #{tpu_custom_call.1} parent=1 // pred_fallthru
      _
    // Predicated region
    $region22: #{tpu_custom_call.1} parent=1 // pred_check
      _
    $region23: #{tpu_custom_call.1} parent=1 // pred_check_branch
      %56 = sbr.rel (0) target = $region25
    $region24: #{tpu_custom_call.1} parent=1 // pred_region
      _
    $region25: #{tpu_custom_call.1} parent=1 // pred_fallthru
      _
    // Predicated region
    $region26: #{tpu_custom_call.1} parent=1 // pred_check
      _
    $region27: #{tpu_custom_call.1} parent=1 // pred_check_branch
      %58 = sbr.rel (0) target = $region29
    $region28: #{tpu_custom_call.1} parent=1 // pred_region
      _
    $region29: #{tpu_custom_call.1} parent=1 // pred_fallthru
      _
    // Predicated region
    $region30: #{tpu_custom_call.1} parent=1 // pred_check
      _
    $region31: #{tpu_custom_call.1} parent=1 // pred_check_branch
      %60 = sbr.rel (0) target = $region33
    $region32: #{tpu_custom_call.1} parent=1 // pred_region
      %61 = dma.done [#allocation4], 128
    $region33: #{tpu_custom_call.1} parent=1 // pred_fallthru
      _
    // Predicated region
    $region34: #{tpu_custom_call.1} parent=1 // pred_check
      _
    $region35: #{tpu_custom_call.1} parent=1 // pred_check_branch
      %63 = sbr.rel (0) target = $region37
    $region36: #{tpu_custom_call.1} parent=1 // pred_region
      %64 = dma.done [#allocation7], 960
    $region37: #{tpu_custom_call.1} parent=1 // pred_fallthru
      _
    // Predicated region
    $region38: #{tpu_custom_call.1} parent=1 // pred_check
      _
    $region39: #{tpu_custom_call.1} parent=1 // pred_check_branch
      %66 = sbr.rel (0) target = $region41
    $region40: #{tpu_custom_call.1} parent=1 // pred_region
      %67 = dma.done [#allocation7], 9216
    $region41: #{tpu_custom_call.1} parent=1 // pred_fallthru
      _
    %v69 = vld [vmem:[#allocation3] sm:$0xff]
    %v70 = vpack.c.bf16 %v69, %v69
    %v71 = vld [vmem:[#allocation6] sm:$0xff]
    %v72 = vld [vmem:[#allocation6 + $0x8] sm:$0xf]
    %v73 = vld [vmem:[#allocation6 + $0xc] sm:$0xff]
    %v74 = vld [vmem:[#allocation6 + $0x14] sm:$0xf]
    %v75 = vld [vmem:[#allocation6 + $0x18] sm:$0xff]
    %v76 = vld [vmem:[#allocation6 + $0x20] sm:$0xf]
    %v77 = vld [vmem:[#allocation6 + $0x24] sm:$0xff]
    %v78 = vld [vmem:[#allocation6 + $0x2c] sm:$0xf]
    %v79 = vld [vmem:[#allocation6 + $0x30] sm:$0xff]
    %v80 = vld [vmem:[#allocation6 + $0x38] sm:$0xf]
    %v81 = vld [vmem:[%s2] sm:$0x7]
    %v83 = vlaneseq
    %v84 = vshrl.u32 %v83, 7
    %v85 = vsub.s32 0, %v84
    %v86 = vrot.slane %v81, %v85
    %v87 = vlaneseq
    %v88 = vshrl.u32 %v87, 7
    %v89 = vsub.s32 1, %v88
    %v90 = vrot.slane %v81, %v89
    %v91 = vlaneseq
    %v92 = vshrl.u32 %v91, 7
    %v93 = vsub.s32 2, %v92
    %v94 = vrot.slane %v81, %v93
    %v108 = vunpack.c.l.b16 %v71
    %v109 = vunpack.c.h.b16 %v71
    %v110 = vunpack.c.l.b16 %v72
    %v111 = vunpack.c.l.b16 %v73
    %v112 = vunpack.c.h.b16 %v73
    %v113 = vunpack.c.l.b16 %v74
    %v114 = vunpack.c.l.b16 %v75
    %v115 = vunpack.c.h.b16 %v75
    %v116 = vunpack.c.l.b16 %v76
    %v117 = vunpack.c.l.b16 %v77
    %v118 = vunpack.c.h.b16 %v77
    %v119 = vunpack.c.l.b16 %v78
    %v120 = vunpack.c.l.b16 %v79
    %v121 = vunpack.c.h.b16 %v79
    %v122 = vunpack.c.l.b16 %v80
    %v123 = vpack.c.b16 %v111, %v108
    %v124 = vpack.c.b16 %v112, %v109
    %v125 = vpack.c.b16 %v113, %v110
    %v126 = vpack.c.b16 %v117, %v114
    %v127 = vpack.c.b16 %v118, %v115
    %v128 = vpack.c.b16 %v119, %v116
    %v129 = vpack.c.b16 %v120, %v120
    %v130 = vpack.c.b16 %v121, %v121
    %v131 = vpack.c.b16 %v122, %v122
    %vm138 = vcmask 326656
    %v140 = vsel %vm138, %v70, 0
    %vm142 = vcmask 1043456
    %v144 = vsel %vm142, %v129, 0
    %v147 = vsel %vm142, %v130, 0
    %v150 = vsel %vm142, %v131, 0
    %152 = vmatprep.subr.bf16.mxu0 %v124
    %153 = vmatpush1.bf16.msra.mxu0 %v123
    %154 = vmatprep.subr.bf16.mxu0 %v127
    %155 = vmatpush1.bf16.msra.mxu0 %v126
    %156 = vmatprep.subr.bf16.mxu0 %v147
    %157 = vmatpush1.bf16.msra.mxu0 %v144
    %158 = vmatprep.subr.bf16.mxu0 0
    %159 = vmatpush1.bf16.msra.mxu0 0
    %160 = vmatprep.subr.bf16.mxu0 0
    %161 = vmatpush1.bf16.msra.mxu0 0
    %162 = vmatprep.subr.bf16.mxu0 0
    %163 = vmatpush1.bf16.msra.mxu0 0
    %164 = vmatprep.subr.bf16.mxu0 0
    %165 = vmatpush1.bf16.msra.mxu0 0
    %166 = vmatprep.subr.bf16.mxu0 0
    %167 = vmatpush1.bf16.msra.mxu0 0
    %168 = vmatprep.subr.bf16.mxu0 0
    %169 = vmatpush1.bf16.msra.mxu0 0
    %170 = vmatprep.subr.bf16.mxu0 0
    %171 = vmatpush1.bf16.msra.mxu0 0
    %172 = vmatprep.subr.bf16.mxu0 0
    %173 = vmatpush1.bf16.msra.mxu0 0
    %174 = vmatprep.subr.bf16.mxu0 0
    %175 = vmatpush1.bf16.msra.mxu0 0
    %176 = vmatprep.subr.bf16.mxu0 0
    %177 = vmatpush1.bf16.msra.mxu0 0
    %178 = vmatprep.subr.bf16.mxu0 0
    %179 = vmatpush1.bf16.msra.mxu0 0
    %180 = vmatprep.subr.bf16.mxu0 0
    %181 = vmatpush1.bf16.msra.mxu0 0
    %182 = vmatprep.subr.bf16.mxu0 0
    %183 = vmatpush1.bf16.msra.mxu0 0
    %184 = vmatprep.mubr.bf16.mxu0 0
    %185 = vmatmul.mubr.bf16.gmra.mrb[0].mxu0 %v140
    %v186 = vpop.f32.mrb[0].mxu0
    %v187 = vadd.f32 %v86, %v186
    %v188 = vpop.f32.mrb[0].mxu0
    %v189 = vadd.f32 %v90, %v188
    %v190 = vpop.f32.mrb[0].mxu0
    %v191 = vpop.f32.mrb[0].mxu0
    %192 = vdwg.mxu0
    %193 = vmatprep.subr.bf16.mxu0 0
    %194 = vmatpush1.bf16.msra.mxu0 %v125
    %195 = vmatprep.subr.bf16.mxu0 0
    %196 = vmatpush1.bf16.msra.mxu0 %v128
    %197 = vmatprep.subr.bf16.mxu0 0
    %198 = vmatpush1.bf16.msra.mxu0 %v150
    %199 = vmatprep.subr.bf16.mxu0 0
    %200 = vmatpush1.bf16.msra.mxu0 0
    %201 = vmatprep.subr.bf16.mxu0 0
    %202 = vmatpush1.bf16.msra.mxu0 0
    %203 = vmatprep.subr.bf16.mxu0 0
    %204 = vmatpush1.bf16.msra.mxu0 0
    %205 = vmatprep.subr.bf16.mxu0 0
    %206 = vmatpush1.bf16.msra.mxu0 0
    %207 = vmatprep.subr.bf16.mxu0 0
    %208 = vmatpush1.bf16.msra.mxu0 0
    %209 = vmatprep.subr.bf16.mxu0 0
    %210 = vmatpush1.bf16.msra.mxu0 0
    %211 = vmatprep.subr.bf16.mxu0 0
    %212 = vmatpush1.bf16.msra.mxu0 0
    %213 = vmatprep.subr.bf16.mxu0 0
    %214 = vmatpush1.bf16.msra.mxu0 0
    %215 = vmatprep.subr.bf16.mxu0 0
    %216 = vmatpush1.bf16.msra.mxu0 0
    %217 = vmatprep.subr.bf16.mxu0 0
    %218 = vmatpush1.bf16.msra.mxu0 0
    %219 = vmatprep.subr.bf16.mxu0 0
    %220 = vmatpush1.bf16.msra.mxu0 0
    %221 = vmatprep.subr.bf16.mxu0 0
    %222 = vmatpush1.bf16.msra.mxu0 0
    %223 = vmatprep.subr.bf16.mxu0 0
    %224 = vmatpush1.bf16.msra.mxu0 0
    %225 = vmatprep.mubr.bf16.mxu0 0
    %226 = vmatmul.mubr.bf16.gmra.mrb[0].mxu0 %v140
    %v227 = vpop.f32.mrb[0].mxu0
    %v228 = vadd.f32 %v94, %v227
    %v229 = vpop.f32.mrb[0].mxu0
    %v230 = vpop.f32.mrb[0].mxu0
    %v231 = vpop.f32.mrb[0].mxu0
    %232 = vdwg.mxu0
    %v233 = vmax.f32 %v187, 0.0
    %v234 = vmax.f32 %v189, 0.0
    %v235 = vmax.f32 %v228, 0.0
    %v236 = vpack.c.bf16 %v233, %v233
    %v237 = vpack.c.bf16 %v234, %v234
    %v238 = vpack.c.bf16 %v235, %v235
    %v239 = vld [vmem:[#allocation8] sm:$0xff]
    %v240 = vld [vmem:[#allocation8 + $0x8] sm:$0xf]
    %v241 = vld [vmem:[#allocation8 + $0xc] sm:$0xff]
    %v242 = vld [vmem:[#allocation8 + $0x14] sm:$0xf]
    %v243 = vld [vmem:[#allocation8 + $0x18] sm:$0xff]
    %v244 = vld [vmem:[#allocation8 + $0x20] sm:$0xf]
    %v245 = vld [vmem:[#allocation8 + $0x24] sm:$0xff]
    %v246 = vld [vmem:[#allocation8 + $0x2c] sm:$0xf]
    %v247 = vld [vmem:[#allocation8 + $0x30] sm:$0xff]
    %v248 = vld [vmem:[#allocation8 + $0x38] sm:$0xf]
    %v249 = vld [vmem:[#allocation8 + $0x3c] sm:$0xff]
    %v250 = vld [vmem:[#allocation8 + $0x44] sm:$0xf]
    %v251 = vld [vmem:[#allocation8 + $0x48] sm:$0xff]
    %v252 = vld [vmem:[#allocation8 + $0x50] sm:$0xf]
    %v253 = vld [vmem:[#allocation8 + $0x54] sm:$0xff]
    %v254 = vld [vmem:[#allocation8 + $0x5c] sm:$0xf]
    %v255 = vld [vmem:[#allocation8 + $0x60] sm:$0xff]
    %v256 = vld [vmem:[#allocation8 + $0x68] sm:$0xf]
    %v257 = vld [vmem:[#allocation8 + $0x6c] sm:$0xff]
    %v258 = vld [vmem:[#allocation8 + $0x74] sm:$0xf]
    %v259 = vld [vmem:[#allocation8 + $0x78] sm:$0xff]
    %v260 = vld [vmem:[#allocation8 + $0x80] sm:$0xf]
    %v261 = vld [vmem:[#allocation8 + $0x84] sm:$0xff]
    %v262 = vld [vmem:[#allocation8 + $0x8c] sm:$0xf]
    %v263 = vld [vmem:[#allocation8 + $0x90] sm:$0xff]
    %v264 = vld [vmem:[#allocation8 + $0x98] sm:$0xf]
    %v265 = vld [vmem:[#allocation8 + $0x9c] sm:$0xff]
    %v266 = vld [vmem:[#allocation8 + $0xa4] sm:$0xf]
    %v267 = vld [vmem:[#allocation8 + $0xa8] sm:$0xff]
    %v268 = vld [vmem:[#allocation8 + $0xb0] sm:$0xf]
    %v269 = vld [vmem:[#allocation8 + $0xb4] sm:$0xff]
    %v270 = vld [vmem:[#allocation8 + $0xbc] sm:$0xf]
    %v271 = vld [vmem:[#allocation8 + $0xc0] sm:$0xff]
    %v272 = vld [vmem:[#allocation8 + $0xc8] sm:$0xf]
    %v273 = vld [vmem:[#allocation8 + $0xcc] sm:$0xff]
    %v274 = vld [vmem:[#allocation8 + $0xd4] sm:$0xf]
    %v275 = vld [vmem:[#allocation8 + $0xd8] sm:$0xff]
    %v276 = vld [vmem:[#allocation8 + $0xe0] sm:$0xf]
    %v277 = vld [vmem:[#allocation8 + $0xe4] sm:$0xff]
    %v278 = vld [vmem:[#allocation8 + $0xec] sm:$0xf]
    %v279 = vld [vmem:[#allocation8 + $0xf0] sm:$0xff]
    %v280 = vld [vmem:[#allocation8 + $0xf8] sm:$0xf]
    %v281 = vld [vmem:[#allocation8 + $0xfc] sm:$0xff]
    %v282 = vld [vmem:[#allocation8 + $0x104] sm:$0xf]
    %v283 = vld [vmem:[#allocation8 + $0x108] sm:$0xff]
    %v284 = vld [vmem:[#allocation8 + $0x110] sm:$0xf]
    %v285 = vld [vmem:[#allocation8 + $0x114] sm:$0xff]
    %v286 = vld [vmem:[#allocation8 + $0x11c] sm:$0xf]
    %v287 = vld [vmem:[#allocation8 + $0x120] sm:$0xff]
    %v288 = vld [vmem:[#allocation8 + $0x128] sm:$0xf]
    %v289 = vld [vmem:[#allocation8 + $0x12c] sm:$0xff]
    %v290 = vld [vmem:[#allocation8 + $0x134] sm:$0xf]
    %v291 = vld [vmem:[#allocation8 + $0x138] sm:$0xff]
    %v292 = vld [vmem:[#allocation8 + $0x140] sm:$0xf]
    %v293 = vld [vmem:[#allocation8 + $0x144] sm:$0xff]
    %v294 = vld [vmem:[#allocation8 + $0x14c] sm:$0xf]
    %v295 = vld [vmem:[#allocation8 + $0x150] sm:$0xff]
    %v296 = vld [vmem:[#allocation8 + $0x158] sm:$0xf]
    %v297 = vld [vmem:[#allocation8 + $0x15c] sm:$0xff]
    %v298 = vld [vmem:[#allocation8 + $0x164] sm:$0xf]
    %v299 = vld [vmem:[#allocation8 + $0x168] sm:$0xff]
    %v300 = vld [vmem:[#allocation8 + $0x170] sm:$0xf]
    %v301 = vld [vmem:[#allocation8 + $0x174] sm:$0xff]
    %v302 = vld [vmem:[#allocation8 + $0x17c] sm:$0xf]
    %v303 = vld [vmem:[#allocation8 + $0x180] sm:$0xff]
    %v304 = vld [vmem:[#allocation8 + $0x188] sm:$0xf]
    %v305 = vld [vmem:[#allocation8 + $0x18c] sm:$0xff]
    %v306 = vld [vmem:[#allocation8 + $0x194] sm:$0xf]
    %v307 = vld [vmem:[#allocation8 + $0x198] sm:$0xff]
    %v308 = vld [vmem:[#allocation8 + $0x1a0] sm:$0xf]
    %v309 = vld [vmem:[#allocation8 + $0x1a4] sm:$0xff]
    %v310 = vld [vmem:[#allocation8 + $0x1ac] sm:$0xf]
    %v311 = vld [vmem:[#allocation8 + $0x1b0] sm:$0xff]
    %v312 = vld [vmem:[#allocation8 + $0x1b8] sm:$0xf]
    %v313 = vld [vmem:[#allocation8 + $0x1bc] sm:$0xff]
    %v314 = vld [vmem:[#allocation8 + $0x1c4] sm:$0xf]
    %v315 = vld [vmem:[#allocation8 + $0x1c8] sm:$0xff]
    %v316 = vld [vmem:[#allocation8 + $0x1d0] sm:$0xf]
    %v317 = vld [vmem:[#allocation8 + $0x1d4] sm:$0xff]
    %v318 = vld [vmem:[#allocation8 + $0x1dc] sm:$0xf]
    %v319 = vld [vmem:[#allocation8 + $0x1e0] sm:$0xff]
    %v320 = vld [vmem:[#allocation8 + $0x1e8] sm:$0xf]
    %v321 = vld [vmem:[#allocation8 + $0x1ec] sm:$0xff]
    %v322 = vld [vmem:[#allocation8 + $0x1f4] sm:$0xf]
    %v323 = vld [vmem:[#allocation8 + $0x1f8] sm:$0xff]
    %v324 = vld [vmem:[#allocation8 + $0x200] sm:$0xf]
    %v325 = vld [vmem:[#allocation8 + $0x204] sm:$0xff]
    %v326 = vld [vmem:[#allocation8 + $0x20c] sm:$0xf]
    %v327 = vld [vmem:[#allocation8 + $0x210] sm:$0xff]
    %v328 = vld [vmem:[#allocation8 + $0x218] sm:$0xf]
    %v329 = vld [vmem:[#allocation8 + $0x21c] sm:$0xff]
    %v330 = vld [vmem:[#allocation8 + $0x224] sm:$0xf]
    %v331 = vld [vmem:[#allocation8 + $0x228] sm:$0xff]
    %v332 = vld [vmem:[#allocation8 + $0x230] sm:$0xf]
    %v333 = vld [vmem:[#allocation8 + $0x234] sm:$0xff]
    %v334 = vld [vmem:[#allocation8 + $0x23c] sm:$0xf]
    %v335 = vld [vmem:[%s4] sm:$0x7]
    %v337 = vlaneseq
    %v338 = vshrl.u32 %v337, 7
    %v339 = vsub.s32 0, %v338
    %v340 = vrot.slane %v335, %v339
    %v341 = vlaneseq
    %v342 = vshrl.u32 %v341, 7
    %v343 = vsub.s32 1, %v342
    %v344 = vrot.slane %v335, %v343
    %v345 = vlaneseq
    %v346 = vshrl.u32 %v345, 7
    %v347 = vsub.s32 2, %v346
    %v348 = vrot.slane %v335, %v347
    %v448 = vunpack.c.l.b16 %v239
    %v449 = vunpack.c.h.b16 %v239
    %v450 = vunpack.c.l.b16 %v240
    %v451 = vunpack.c.l.b16 %v241
    %v452 = vunpack.c.h.b16 %v241
    %v453 = vunpack.c.l.b16 %v242
    %v454 = vunpack.c.l.b16 %v243
    %v455 = vunpack.c.h.b16 %v243
    %v456 = vunpack.c.l.b16 %v244
    %v457 = vunpack.c.l.b16 %v245
    %v458 = vunpack.c.h.b16 %v245
    %v459 = vunpack.c.l.b16 %v246
    %v460 = vunpack.c.l.b16 %v247
    %v461 = vunpack.c.h.b16 %v247
    %v462 = vunpack.c.l.b16 %v248
    %v463 = vunpack.c.l.b16 %v249
    %v464 = vunpack.c.h.b16 %v249
    %v465 = vunpack.c.l.b16 %v250
    %v466 = vunpack.c.l.b16 %v251
    %v467 = vunpack.c.h.b16 %v251
    %v468 = vunpack.c.l.b16 %v252
    %v469 = vunpack.c.l.b16 %v253
    %v470 = vunpack.c.h.b16 %v253
    %v471 = vunpack.c.l.b16 %v254
    %v472 = vunpack.c.l.b16 %v255
    %v473 = vunpack.c.h.b16 %v255
    %v474 = vunpack.c.l.b16 %v256
    %v475 = vunpack.c.l.b16 %v257
    %v476 = vunpack.c.h.b16 %v257
    %v477 = vunpack.c.l.b16 %v258
    %v478 = vunpack.c.l.b16 %v259
    %v479 = vunpack.c.h.b16 %v259
    %v480 = vunpack.c.l.b16 %v260
    %v481 = vunpack.c.l.b16 %v261
    %v482 = vunpack.c.h.b16 %v261
    %v483 = vunpack.c.l.b16 %v262
    %v484 = vunpack.c.l.b16 %v263
    %v485 = vunpack.c.h.b16 %v263
    %v486 = vunpack.c.l.b16 %v264
    %v487 = vunpack.c.l.b16 %v265
    %v488 = vunpack.c.h.b16 %v265
    %v489 = vunpack.c.l.b16 %v266
    %v490 = vunpack.c.l.b16 %v267
    %v491 = vunpack.c.h.b16 %v267
    %v492 = vunpack.c.l.b16 %v268
    %v493 = vunpack.c.l.b16 %v269
    %v494 = vunpack.c.h.b16 %v269
    %v495 = vunpack.c.l.b16 %v270
    %v496 = vunpack.c.l.b16 %v271
    %v497 = vunpack.c.h.b16 %v271
    %v498 = vunpack.c.l.b16 %v272
    %v499 = vunpack.c.l.b16 %v273
    %v500 = vunpack.c.h.b16 %v273
    %v501 = vunpack.c.l.b16 %v274
    %v502 = vunpack.c.l.b16 %v275
    %v503 = vunpack.c.h.b16 %v275
    %v504 = vunpack.c.l.b16 %v276
    %v505 = vunpack.c.l.b16 %v277
    %v506 = vunpack.c.h.b16 %v277
    %v507 = vunpack.c.l.b16 %v278
    %v508 = vunpack.c.l.b16 %v279
    %v509 = vunpack.c.h.b16 %v279
    %v510 = vunpack.c.l.b16 %v280
    %v511 = vunpack.c.l.b16 %v281
    %v512 = vunpack.c.h.b16 %v281
    %v513 = vunpack.c.l.b16 %v282
    %v514 = vunpack.c.l.b16 %v283
    %v515 = vunpack.c.h.b16 %v283
    %v516 = vunpack.c.l.b16 %v284
    %v517 = vunpack.c.l.b16 %v285
    %v518 = vunpack.c.h.b16 %v285
    %v519 = vunpack.c.l.b16 %v286
    %v520 = vunpack.c.l.b16 %v287
    %v521 = vunpack.c.h.b16 %v287
    %v522 = vunpack.c.l.b16 %v288
    %v523 = vunpack.c.l.b16 %v289
    %v524 = vunpack.c.h.b16 %v289
    %v525 = vunpack.c.l.b16 %v290
    %v526 = vunpack.c.l.b16 %v291
    %v527 = vunpack.c.h.b16 %v291
    %v528 = vunpack.c.l.b16 %v292
    %v529 = vunpack.c.l.b16 %v293
    %v530 = vunpack.c.h.b16 %v293
    %v531 = vunpack.c.l.b16 %v294
    %v532 = vunpack.c.l.b16 %v295
    %v533 = vunpack.c.h.b16 %v295
    %v534 = vunpack.c.l.b16 %v296
    %v535 = vunpack.c.l.b16 %v297
    %v536 = vunpack.c.h.b16 %v297
    %v537 = vunpack.c.l.b16 %v298
    %v538 = vunpack.c.l.b16 %v299
    %v539 = vunpack.c.h.b16 %v299
    %v540 = vunpack.c.l.b16 %v300
    %v541 = vunpack.c.l.b16 %v301
    %v542 = vunpack.c.h.b16 %v301
    %v543 = vunpack.c.l.b16 %v302
    %v544 = vunpack.c.l.b16 %v303
    %v545 = vunpack.c.h.b16 %v303
    %v546 = vunpack.c.l.b16 %v304
    %v547 = vunpack.c.l.b16 %v305
    %v548 = vunpack.c.h.b16 %v305
    %v549 = vunpack.c.l.b16 %v306
    %v550 = vunpack.c.l.b16 %v307
    %v551 = vunpack.c.h.b16 %v307
    %v552 = vunpack.c.l.b16 %v308
    %v553 = vunpack.c.l.b16 %v309
    %v554 = vunpack.c.h.b16 %v309
    %v555 = vunpack.c.l.b16 %v310
    %v556 = vunpack.c.l.b16 %v311
    %v557 = vunpack.c.h.b16 %v311
    %v558 = vunpack.c.l.b16 %v312
    %v559 = vunpack.c.l.b16 %v313
    %v560 = vunpack.c.h.b16 %v313
    %v561 = vunpack.c.l.b16 %v314
    %v562 = vunpack.c.l.b16 %v315
    %v563 = vunpack.c.h.b16 %v315
    %v564 = vunpack.c.l.b16 %v316
    %v565 = vunpack.c.l.b16 %v317
    %v566 = vunpack.c.h.b16 %v317
    %v567 = vunpack.c.l.b16 %v318
    %v568 = vunpack.c.l.b16 %v319
    %v569 = vunpack.c.h.b16 %v319
    %v570 = vunpack.c.l.b16 %v320
    %v571 = vunpack.c.l.b16 %v321
    %v572 = vunpack.c.h.b16 %v321
    %v573 = vunpack.c.l.b16 %v322
    %v574 = vunpack.c.l.b16 %v323
    %v575 = vunpack.c.h.b16 %v323
    %v576 = vunpack.c.l.b16 %v324
    %v577 = vunpack.c.l.b16 %v325
    %v578 = vunpack.c.h.b16 %v325
    %v579 = vunpack.c.l.b16 %v326
    %v580 = vunpack.c.l.b16 %v327
    %v581 = vunpack.c.h.b16 %v327
    %v582 = vunpack.c.l.b16 %v328
    %v583 = vunpack.c.l.b16 %v329
    %v584 = vunpack.c.h.b16 %v329
    %v585 = vunpack.c.l.b16 %v330
    %v586 = vunpack.c.l.b16 %v331
    %v587 = vunpack.c.h.b16 %v331
    %v588 = vunpack.c.l.b16 %v332
    %v589 = vunpack.c.l.b16 %v333
    %v590 = vunpack.c.h.b16 %v333
    %v591 = vunpack.c.l.b16 %v334
    %v592 = vpack.c.b16 %v451, %v448
    %v593 = vpack.c.b16 %v452, %v449
    %v594 = vpack.c.b16 %v453, %v450
    %v595 = vpack.c.b16 %v457, %v454
    %v596 = vpack.c.b16 %v458, %v455
    %v597 = vpack.c.b16 %v459, %v456
    %v598 = vpack.c.b16 %v463, %v460
    %v599 = vpack.c.b16 %v464, %v461
    %v600 = vpack.c.b16 %v465, %v462
    %v601 = vpack.c.b16 %v469, %v466
    %v602 = vpack.c.b16 %v470, %v467
    %v603 = vpack.c.b16 %v471, %v468
    %v604 = vpack.c.b16 %v475, %v472
    %v605 = vpack.c.b16 %v476, %v473
    %v606 = vpack.c.b16 %v477, %v474
    %v607 = vpack.c.b16 %v481, %v478
    %v608 = vpack.c.b16 %v482, %v479
    %v609 = vpack.c.b16 %v483, %v480
    %v610 = vpack.c.b16 %v487, %v484
    %v611 = vpack.c.b16 %v488, %v485
    %v612 = vpack.c.b16 %v489, %v486
    %v613 = vpack.c.b16 %v493, %v490
    %v614 = vpack.c.b16 %v494, %v491
    %v615 = vpack.c.b16 %v495, %v492
    %v616 = vpack.c.b16 %v499, %v496
    %v617 = vpack.c.b16 %v500, %v497
    %v618 = vpack.c.b16 %v501, %v498
    %v619 = vpack.c.b16 %v505, %v502
    %v620 = vpack.c.b16 %v506, %v503
    %v621 = vpack.c.b16 %v507, %v504
    %v622 = vpack.c.b16 %v511, %v508
    %v623 = vpack.c.b16 %v512, %v509
    %v624 = vpack.c.b16 %v513, %v510
    %v625 = vpack.c.b16 %v517, %v514
    %v626 = vpack.c.b16 %v518, %v515
    %v627 = vpack.c.b16 %v519, %v516
    %v628 = vpack.c.b16 %v523, %v520
    %v629 = vpack.c.b16 %v524, %v521
    %v630 = vpack.c.b16 %v525, %v522
    %v631 = vpack.c.b16 %v529, %v526
    %v632 = vpack.c.b16 %v530, %v527
    %v633 = vpack.c.b16 %v531, %v528
    %v634 = vpack.c.b16 %v535, %v532
    %v635 = vpack.c.b16 %v536, %v533
    %v636 = vpack.c.b16 %v537, %v534
    %v637 = vpack.c.b16 %v541, %v538
    %v638 = vpack.c.b16 %v542, %v539
    %v639 = vpack.c.b16 %v543, %v540
    %v640 = vpack.c.b16 %v547, %v544
    %v641 = vpack.c.b16 %v548, %v545
    %v642 = vpack.c.b16 %v549, %v546
    %v643 = vpack.c.b16 %v553, %v550
    %v644 = vpack.c.b16 %v554, %v551
    %v645 = vpack.c.b16 %v555, %v552
    %v646 = vpack.c.b16 %v559, %v556
    %v647 = vpack.c.b16 %v560, %v557
    %v648 = vpack.c.b16 %v561, %v558
    %v649 = vpack.c.b16 %v565, %v562
    %v650 = vpack.c.b16 %v566, %v563
    %v651 = vpack.c.b16 %v567, %v564
    %v652 = vpack.c.b16 %v571, %v568
    %v653 = vpack.c.b16 %v572, %v569
    %v654 = vpack.c.b16 %v573, %v570
    %v655 = vpack.c.b16 %v577, %v574
    %v656 = vpack.c.b16 %v578, %v575
    %v657 = vpack.c.b16 %v579, %v576
    %v658 = vpack.c.b16 %v583, %v580
    %v659 = vpack.c.b16 %v584, %v581
    %v660 = vpack.c.b16 %v585, %v582
    %v661 = vpack.c.b16 %v589, %v586
    %v662 = vpack.c.b16 %v590, %v587
    %v663 = vpack.c.b16 %v591, %v588
    %736 = vmatprep.subr.bf16.mxu0 %v593
    %737 = vmatpush1.bf16.msra.mxu0 %v592
    %738 = vmatprep.subr.bf16.mxu0 %v596
    %739 = vmatpush1.bf16.msra.mxu0 %v595
    %740 = vmatprep.subr.bf16.mxu0 %v599
    %741 = vmatpush1.bf16.msra.mxu0 %v598
    %742 = vmatprep.subr.bf16.mxu0 %v602
    %743 = vmatpush1.bf16.msra.mxu0 %v601
    %744 = vmatprep.subr.bf16.mxu0 %v605
    %745 = vmatpush1.bf16.msra.mxu0 %v604
    %746 = vmatprep.subr.bf16.mxu0 %v608
    %747 = vmatpush1.bf16.msra.mxu0 %v607
    %748 = vmatprep.subr.bf16.mxu0 %v611
    %749 = vmatpush1.bf16.msra.mxu0 %v610
    %750 = vmatprep.subr.bf16.mxu0 %v614
    %751 = vmatpush1.bf16.msra.mxu0 %v613
    %752 = vmatprep.subr.bf16.mxu0 %v617
    %753 = vmatpush1.bf16.msra.mxu0 %v616
    %754 = vmatprep.subr.bf16.mxu0 %v620
    %755 = vmatpush1.bf16.msra.mxu0 %v619
    %756 = vmatprep.subr.bf16.mxu0 %v623
    %757 = vmatpush1.bf16.msra.mxu0 %v622
    %758 = vmatprep.subr.bf16.mxu0 %v626
    %759 = vmatpush1.bf16.msra.mxu0 %v625
    %760 = vmatprep.subr.bf16.mxu0 %v629
    %761 = vmatpush1.bf16.msra.mxu0 %v628
    %762 = vmatprep.subr.bf16.mxu0 %v632
    %763 = vmatpush1.bf16.msra.mxu0 %v631
    %764 = vmatprep.subr.bf16.mxu0 %v635
    %765 = vmatpush1.bf16.msra.mxu0 %v634
    %766 = vmatprep.subr.bf16.mxu0 %v638
    %767 = vmatpush1.bf16.msra.mxu0 %v637
    %768 = vmatprep.mubr.bf16.mxu0 %v237
    %769 = vmatmul.mubr.bf16.gmra.mrb[0].mxu0 %v236
    %v770 = vpop.f32.mrb[0].mxu0
    %v771 = vadd.f32 %v340, %v770
    %v772 = vpop.f32.mrb[0].mxu0
    %v773 = vadd.f32 %v344, %v772
    %v774 = vpop.f32.mrb[0].mxu0
    %v775 = vpop.f32.mrb[0].mxu0
    %776 = vdwg.mxu0
    %777 = vmatprep.subr.bf16.mxu0 %v641
    %778 = vmatpush1.bf16.msra.mxu0 %v640
    %779 = vmatprep.subr.bf16.mxu0 %v644
    %780 = vmatpush1.bf16.msra.mxu0 %v643
    %781 = vmatprep.subr.bf16.mxu0 %v647
    %782 = vmatpush1.bf16.msra.mxu0 %v646
    %783 = vmatprep.subr.bf16.mxu0 %v650
    %784 = vmatpush1.bf16.msra.mxu0 %v649
    %785 = vmatprep.subr.bf16.mxu0 %v653
    %786 = vmatpush1.bf16.msra.mxu0 %v652
    %787 = vmatprep.subr.bf16.mxu0 %v656
    %788 = vmatpush1.bf16.msra.mxu0 %v655
    %789 = vmatprep.subr.bf16.mxu0 %v659
    %790 = vmatpush1.bf16.msra.mxu0 %v658
    %791 = vmatprep.subr.bf16.mxu0 %v662
    %792 = vmatpush1.bf16.msra.mxu0 %v661
    %793 = vmatprep.subr.bf16.mxu0 0
    %794 = vmatpush1.bf16.msra.mxu0 0
    %795 = vmatprep.subr.bf16.mxu0 0
    %796 = vmatpush1.bf16.msra.mxu0 0
    %797 = vmatprep.subr.bf16.mxu0 0
    %798 = vmatpush1.bf16.msra.mxu0 0
    %799 = vmatprep.subr.bf16.mxu0 0
    %800 = vmatpush1.bf16.msra.mxu0 0
    %801 = vmatprep.subr.bf16.mxu0 0
    %802 = vmatpush1.bf16.msra.mxu0 0
    %803 = vmatprep.subr.bf16.mxu0 0
    %804 = vmatpush1.bf16.msra.mxu0 0
    %805 = vmatprep.subr.bf16.mxu0 0
    %806 = vmatpush1.bf16.msra.mxu0 0
    %807 = vmatprep.subr.bf16.mxu0 0
    %808 = vmatpush1.bf16.msra.mxu0 0
    %809 = vmatprep.mubr.bf16.mxu0 0
    %810 = vmatmul.mubr.bf16.gmra.mrb[0].mxu0 %v238
    %v811 = vpop.f32.mrb[0].mxu0
    %v812 = vadd.f32 %v771, %v811
    %v813 = vpop.f32.mrb[0].mxu0
    %v814 = vadd.f32 %v773, %v813
    %v815 = vpop.f32.mrb[0].mxu0
    %v816 = vpop.f32.mrb[0].mxu0
    %817 = vdwg.mxu0
    %818 = vmatprep.subr.bf16.mxu0 0
    %819 = vmatpush1.bf16.msra.mxu0 %v594
    %820 = vmatprep.subr.bf16.mxu0 0
    %821 = vmatpush1.bf16.msra.mxu0 %v597
    %822 = vmatprep.subr.bf16.mxu0 0
    %823 = vmatpush1.bf16.msra.mxu0 %v600
    %824 = vmatprep.subr.bf16.mxu0 0
    %825 = vmatpush1.bf16.msra.mxu0 %v603
    %826 = vmatprep.subr.bf16.mxu0 0
    %827 = vmatpush1.bf16.msra.mxu0 %v606
    %828 = vmatprep.subr.bf16.mxu0 0
    %829 = vmatpush1.bf16.msra.mxu0 %v609
    %830 = vmatprep.subr.bf16.mxu0 0
    %831 = vmatpush1.bf16.msra.mxu0 %v612
    %832 = vmatprep.subr.bf16.mxu0 0
    %833 = vmatpush1.bf16.msra.mxu0 %v615
    %834 = vmatprep.subr.bf16.mxu0 0
    %835 = vmatpush1.bf16.msra.mxu0 %v618
    %836 = vmatprep.subr.bf16.mxu0 0
    %837 = vmatpush1.bf16.msra.mxu0 %v621
    %838 = vmatprep.subr.bf16.mxu0 0
    %839 = vmatpush1.bf16.msra.mxu0 %v624
    %840 = vmatprep.subr.bf16.mxu0 0
    %841 = vmatpush1.bf16.msra.mxu0 %v627
    %842 = vmatprep.subr.bf16.mxu0 0
    %843 = vmatpush1.bf16.msra.mxu0 %v630
    %844 = vmatprep.subr.bf16.mxu0 0
    %845 = vmatpush1.bf16.msra.mxu0 %v633
    %846 = vmatprep.subr.bf16.mxu0 0
    %847 = vmatpush1.bf16.msra.mxu0 %v636
    %848 = vmatprep.subr.bf16.mxu0 0
    %849 = vmatpush1.bf16.msra.mxu0 %v639
    %850 = vmatprep.mubr.bf16.mxu0 %v237
    %851 = vmatmul.mubr.bf16.gmra.mrb[0].mxu0 %v236
    %v852 = vpop.f32.mrb[0].mxu0
    %v853 = vadd.f32 %v348, %v852
    %v854 = vpop.f32.mrb[0].mxu0
    %v855 = vpop.f32.mrb[0].mxu0
    %v856 = vpop.f32.mrb[0].mxu0
    %857 = vdwg.mxu0
    %858 = vmatprep.subr.bf16.mxu0 0
    %859 = vmatpush1.bf16.msra.mxu0 %v642
    %860 = vmatprep.subr.bf16.mxu0 0
    %861 = vmatpush1.bf16.msra.mxu0 %v645
    %862 = vmatprep.subr.bf16.mxu0 0
    %863 = vmatpush1.bf16.msra.mxu0 %v648
    %864 = vmatprep.subr.bf16.mxu0 0
    %865 = vmatpush1.bf16.msra.mxu0 %v651
    %866 = vmatprep.subr.bf16.mxu0 0
    %867 = vmatpush1.bf16.msra.mxu0 %v654
    %868 = vmatprep.subr.bf16.mxu0 0
    %869 = vmatpush1.bf16.msra.mxu0 %v657
    %870 = vmatprep.subr.bf16.mxu0 0
    %871 = vmatpush1.bf16.msra.mxu0 %v660
    %872 = vmatprep.subr.bf16.mxu0 0
    %873 = vmatpush1.bf16.msra.mxu0 %v663
    %874 = vmatprep.subr.bf16.mxu0 0
    %875 = vmatpush1.bf16.msra.mxu0 0
    %876 = vmatprep.subr.bf16.mxu0 0
    %877 = vmatpush1.bf16.msra.mxu0 0
    %878 = vmatprep.subr.bf16.mxu0 0
    %879 = vmatpush1.bf16.msra.mxu0 0
    %880 = vmatprep.subr.bf16.mxu0 0
    %881 = vmatpush1.bf16.msra.mxu0 0
    %882 = vmatprep.subr.bf16.mxu0 0
    %883 = vmatpush1.bf16.msra.mxu0 0
    %884 = vmatprep.subr.bf16.mxu0 0
    %885 = vmatpush1.bf16.msra.mxu0 0
    %886 = vmatprep.subr.bf16.mxu0 0
    %887 = vmatpush1.bf16.msra.mxu0 0
    %888 = vmatprep.subr.bf16.mxu0 0
    %889 = vmatpush1.bf16.msra.mxu0 0
    %890 = vmatprep.mubr.bf16.mxu0 0
    %891 = vmatmul.mubr.bf16.gmra.mrb[0].mxu0 %v238
    %v892 = vpop.f32.mrb[0].mxu0
    %v893 = vadd.f32 %v853, %v892
    %v894 = vpop.f32.mrb[0].mxu0
    %v895 = vpop.f32.mrb[0].mxu0
    %v896 = vpop.f32.mrb[0].mxu0
    %897 = vdwg.mxu0
    %v898 = vmax.f32 %v812, 0.0
    %v899 = vmax.f32 %v814, 0.0
    %v900 = vmax.f32 %v893, 0.0
    %v901 = vld [vmem:[%s5] sm:$0x7]
    %v903 = vlaneseq
    %v904 = vshrl.u32 %v903, 7
    %v905 = vsub.s32 0, %v904
    %v906 = vrot.slane %v901, %v905
    %v907 = vlaneseq
    %v908 = vshrl.u32 %v907, 7
    %v909 = vsub.s32 1, %v908
    %v910 = vrot.slane %v901, %v909
    %v911 = vlaneseq
    %v912 = vshrl.u32 %v911, 7
    %v913 = vsub.s32 2, %v912
    %v914 = vrot.slane %v901, %v913
    %v918 = vmul.f32 %v898, %v906
    %v919 = vmul.f32 %v899, %v910
    %v920 = vmul.f32 %v900, %v914
    %v921 = vadd.f32 %v918, %v919
    %v922 = vadd.f32 %v921, %v920
    %923 = vadd.xlane.f32.xlu0 %v922
    %v924 = vpop.xlane.xlu0 %923
    %v925 = vld [vmem:[#allocation2] sm:$0x1]
    %927 = vset.pattern.permute.xlu0 0
    %928 = vperm.xlu0 %927, %v925
    %v929 = vpop.permute.xlu0 %928
    %v931 = vlaneseq
    %v932 = vshrl.u32 %v931, 7
    %v933 = vsub.s32 0, %v932
    %v934 = vrot.slane %v929, %v933
    %v935 = vadd.f32 %v924, %v934
    %v937 = vlaneseq
    %v938 = vand.u32 %v937, 127
    %v939 = vlaneseq
    %v940 = vshrl.u32 %v939, 7
    %v941 = vsub.s32 %v938, %v940
    %v942 = vrot.slane %v935, %v941
    %vm944 = vcmask 57344
    %945 = vst.msk [vmem:[#allocation9] sm:$0x1] %vm944, %v942
    // Predicated region
    $region42: #{tpu_custom_call.1} parent=1 // pred_check
      _
    $region43: #{tpu_custom_call.1} parent=1 // pred_check_branch
      %947 = sbr.rel (0) target = $region45
    $region44: #{tpu_custom_call.1} parent=1 // pred_region
      %s949 = ssub.s32 16, 16
      %950 = vsyncadd [#allocation5], %s949
      %s952 = sshll.u32 [#allocation9], 4
      %s953 = int_to_ptr.vmem [resolvable:$true] %s952
      %955 = dma.vmem_to_hbm [thread:$0]  %s953, 16, %s7, [#allocation5]
    $region45: #{tpu_custom_call.1} parent=1 // pred_fallthru
      _
    // Predicated region
    $region46: #{tpu_custom_call.1} parent=1 // pred_check
      _
    $region47: #{tpu_custom_call.1} parent=1 // pred_check_branch
      %957 = sbr.rel (0) target = $region49
    $region48: #{tpu_custom_call.1} parent=1 // pred_region
      %958 = dma.done [#allocation5], 16
    $region49: #{tpu_custom_call.1} parent=1 // pred_fallthru
      _
    %959 = vsyncpa [#allocation4], 1
    %960 = vsyncpa [#allocation7], 1
    %961 = vsyncpa [#allocation5], 1

</llo_original>
